<compile_context>
chip_gen: v7x
topology: tpu7x:2x2x1
jax: 0.10.0
libtpu: 0.0.40
codegen_flags: <defaults>
</compile_context>

<pallas_src>
import functools

import jax
import jax.numpy as jnp
from jax.experimental import pallas as pl
from jax.experimental.pallas import tpu as pltpu


def _round_up(x, m):
    return ((x + m - 1) // m) * m


def _stack_kernel(n_flows, use_bf16_math,
                  u_ref, c_ref, w_ref, b_ref, x_ref, logd_ref):
    """One batch tile of the full flow stack.

    u_ref    : [tB, D]                  input tile (f32)
    c_ref    : [tB, S_pad]              gathered coupling u[:, starts] (padded)
    w_ref    : [S_pad, 2*n_flows*D]     fused weights
                                        columns = [s_0|..|s_{n-1}|t_0|..|t_{n-1}]
    b_ref    : [1, 2*n_flows*D]         fused biases (f32)
    x_ref    : [tB, D]                  transformed x (aliases u in HBM)
    logd_ref : [tB, 1]                  accumulated log-determinant per sample
    """
    u = u_ref[...]                                      # [tB, D] f32
    D = u_ref.shape[1]

    # Single fused MXU matmul (K = n_starts_pad) for every flow's s/t
    # pre-activation.  Operands may be bf16; accumulation is always f32.
    pre = jnp.dot(c_ref[...].astype(w_ref.dtype), w_ref[...],
                  preferred_element_type=jnp.float32) + b_ref[...]   # [tB, 2nD]

    x = u
    s_sum = jnp.zeros_like(u)                           # f32 VPU accumulator
    for i in range(n_flows):                            # small, static, unrolled
        pre_s = pre[:, i * D:(i + 1) * D]                             # [tB, D]
        pre_t = pre[:, (n_flows + i) * D:(n_flows + i + 1) * D]
        if use_bf16_math:
            # bf16 EUP path (v6e / v7x): tanh & exp in bf16, accumulate in f32.
            s_lo = jnp.tanh(pre_s.astype(jnp.bfloat16))
            e = jnp.exp(s_lo).astype(jnp.float32)
            s = s_lo.astype(jnp.float32)
        else:
            s = jnp.tanh(pre_s)                                       # EUP
            e = jnp.exp(s)
        x = x * e + pre_t                               # serial affine update (VPU)
        s_sum = s_sum + s                               # defer the XLU reduction

    x_ref[...] = x
    # One cross-lane reduction for the whole stack instead of one per flow.
    logd_ref[...] = jnp.sum(s_sum, axis=-1, keepdims=True)


def prepare_params(w_s, b_s, w_t, b_t, *, use_bf16_matmul=False):
    """Concatenate all per-flow weights/biases into one [S_pad, 2nD] matrix.

    The coupling gather is NOT folded into the weights any more: the kernel
    consumes the gathered [B, n_starts] coupling directly, so the contraction
    size is n_starts (padded to a sublane multiple with zero rows), and
    duplicate `starts` indices behave exactly like the reference.
    """
    n_flows, S, _ = w_s.shape
    w_cat = jnp.concatenate([w_s[i] for i in range(n_flows)]
                            + [w_t[i] for i in range(n_flows)], axis=1)   # [S, 2nD]
    b_cat = jnp.concatenate([b_s[i] for i in range(n_flows)]
                            + [b_t[i] for i in range(n_flows)], axis=1)   # [1, 2nD]
    s_pad = _round_up(S, 8)
    if s_pad != S:
        w_cat = jnp.pad(w_cat, ((0, s_pad - S), (0, 0)))
    if use_bf16_matmul:
        # MXU operands only; biases and all f32-path elementwise math stay f32.
        w_cat = w_cat.astype(jnp.bfloat16)
    return w_cat, b_cat


def _choose_tiling(batch, p_cols, d_model, c_itemsize):
    """Pick (tile_B, padded_B): large, never-degenerate tiles, >=2 grid steps.

    Pads the batch UP to a multiple of the chosen tile (instead of requiring
    divisibility), guarantees at least 2 grid steps so v7x's two TensorCores
    both get work, and bounds the per-step VMEM footprint (u/x double buffers
    plus the materialized `pre` intermediate) so tiles also fit v7x's 64 MiB.
    """
    b8 = _round_up(max(batch, 1), 8)
    for t in (1024, 512, 256, 128, 64, 32, 16, 8):
        padded = _round_up(b8, t)
        if padded < 2 * t:
            padded = 2 * t                      # guarantee >= 2 grid steps
        # u + x double buffers, coupling double buffer, pre + temporaries.
        vmem = 4 * t * d_model * 4 + 2 * t * 8 * c_itemsize + 3 * t * p_cols * 4
        if vmem > (24 << 20):
            continue
        waste = padded - b8
        if 2 * waste <= b8 or t == 8:           # accept <=50% padding waste
            return t, padded
    return 8, max(_round_up(b8, 8), 16)


def _bf16_elementwise_supported():
    """bf16 tanh/exp only where the EUP supports bf16 (v6e / v7x)."""
    try:
        kind = jax.devices()[0].device_kind.lower()
    except Exception:
        return False
    return any(tag in kind for tag in ("v6", "v7", "tpu7", "7x"))


@functools.partial(jax.jit, static_argnames=("n_flows", "use_bf16_math"))
def causal_single_stack_nf_forward(u, starts, w_cat, b_cat, *, n_flows,
                                   use_bf16_math=False):
    """Equivalent of CausalSingleStackNF.forward(u) with clayer != None.

    Returns (x, logd_sum) with x: [B, D] and logd_sum: [B, 1].
    NOTE: x aliases u's (padded, jit-internal) buffer; when no padding is
    needed XLA inserts a defensive copy for callers that keep using u.
    """
    B, D = u.shape
    S_pad, P = w_cat.shape

    # Tiny XLA gather outside the kernel ([B, n_starts] ~ a few KB); padded to
    # the weight matrix's sublane-padded contraction size with zero columns.
    coupling = u[:, starts]
    S = coupling.shape[1]
    if S_pad != S:
        coupling = jnp.pad(coupling, ((0, 0), (0, S_pad - S)))
    coupling = coupling.astype(w_cat.dtype)
    c_itemsize = jnp.dtype(w_cat.dtype).itemsize

    tB, B_pad = _choose_tiling(B, P, D, c_itemsize)
    if B_pad != B:
        u = jnp.pad(u, ((0, B_pad - B), (0, 0)))
        coupling = jnp.pad(coupling, ((0, B_pad - B), (0, 0)))
    grid = (B_pad // tB,)

    cost = pl.CostEstimate(
        flops=2 * B_pad * S_pad * P + 6 * n_flows * B_pad * D,
        transcendentals=2 * n_flows * B_pad * D,
        bytes_accessed=(2 * B_pad * D * 4 + B_pad * S_pad * c_itemsize
                        + B_pad * 4 + S_pad * P * c_itemsize + P * 4),
    )

    # Explicit VMEM budget: u/x double buffers + coupling + weights/biases +
    # the materialized `pre` intermediate, with headroom; capped at v7x's
    # 64 MiB physical VMEM.
    vmem_est = (4 * tB * D * 4 + 2 * tB * S_pad * c_itemsize + 2 * tB * 4
                + S_pad * P * c_itemsize + P * 4 + 3 * tB * P * 4 + (8 << 20))
    vmem_limit = int(min(max(vmem_est, 32 << 20), 64 << 20))

    x, logd = pl.pallas_call(
        functools.partial(_stack_kernel, n_flows, use_bf16_math),
        grid=grid,
        in_specs=[
            pl.BlockSpec((tB, D), lambda b: (b, 0)),       # u tile (pipelined)
            pl.BlockSpec((tB, S_pad), lambda b: (b, 0)),   # coupling tile
            pl.BlockSpec((S_pad, P), lambda b: (0, 0)),    # weights: VMEM-resident
            pl.BlockSpec((1, P), lambda b: (0, 0)),        # biases:  VMEM-resident
        ],
        out_specs=(
            pl.BlockSpec((tB, D), lambda b: (b, 0)),       # x (aliases u's HBM buf)
            pl.BlockSpec((tB, 1), lambda b: (b, 0)),       # logd
        ),
        out_shape=(
            jax.ShapeDtypeStruct((B_pad, D), jnp.float32),
            jax.ShapeDtypeStruct((B_pad, 1), jnp.float32),
        ),
        input_output_aliases={0: 0},
        compiler_params=pltpu.CompilerParams(
            dimension_semantics=("parallel",),
            vmem_limit_bytes=vmem_limit),
        cost_estimate=cost,
    )(u, coupling, w_cat, b_cat)

    return x[:B], logd[:B]


def _reference_forward(u, starts, w_s, b_s, w_t, b_t):
    """Pure-JAX reference mirroring the PyTorch module semantics."""
    x = u
    logd_sum = jnp.zeros((u.shape[0], 1), jnp.float32)
    c = u[:, starts]
    for i in range(w_s.shape[0]):
        s = jnp.tanh(c @ w_s[i] + b_s[i])
        t = c @ w_t[i] + b_t[i]
        x = x * jnp.exp(s) + t
        logd_sum = logd_sum + jnp.sum(s, axis=-1, keepdims=True)
    return x, logd_sum


if __name__ == "__main__":
    B, D = 10, 128         # awkward batch on purpose: exercises tile padding
    n_flows = 3            # len(flows)
    n_starts = 8           # len(clayer.starts)

    key = jax.random.PRNGKey(0)
    k_u, k_ws, k_bs, k_wt, k_bt = jax.random.split(key, 5)

    u = jax.random.normal(k_u, (B, D), dtype=jnp.float32)

    # clayer.starts : deterministic strided indices into the feature axis.
    starts = jnp.arange(0, D, D // n_starts, dtype=jnp.int32)      # [8]

    # Per-flow affine-flow parameters (deterministic init, small scale).
    w_s = 0.1 * jax.random.normal(k_ws, (n_flows, n_starts, D), jnp.float32)
    b_s = 0.1 * jax.random.normal(k_bs, (n_flows, 1, D), jnp.float32)
    w_t = 0.1 * jax.random.normal(k_wt, (n_flows, n_starts, D), jnp.float32)
    b_t = 0.1 * jax.random.normal(k_bt, (n_flows, 1, D), jnp.float32)

    # Module-level coupling_s / coupling_t parameters: created as in __init__
    # (ones / zeros) but never used in forward(), exactly like the reference.
    coupling_s = jnp.ones((n_flows, n_starts), jnp.float32)
    coupling_t = jnp.zeros((n_flows, n_starts), jnp.float32)
    del coupling_s, coupling_t

    # TODO(synk): the clayer==None branch (unconditional flows) and the
    # reward() inverse pass are not exercised here; the former is the same
    # kernel with the coupling matmul removed.

    x_ref, logd_ref = _reference_forward(u, starts, w_s, b_s, w_t, b_t)

    # --- f32 path (exact w.r.t. the f32 reference) --------------------------
    w_cat, b_cat = prepare_params(w_s, b_s, w_t, b_t)
    x_out, logd_out = causal_single_stack_nf_forward(
        u, starts, w_cat, b_cat, n_flows=n_flows, use_bf16_math=False)
    jax.block_until_ready((x_out, logd_out))
    assert jnp.allclose(x_out, x_ref, atol=1e-4, rtol=1e-4)
    assert jnp.allclose(logd_out, logd_ref, atol=1e-4, rtol=1e-4)

    # --- perf path: bf16 MXU operands everywhere; bf16 tanh/exp only where
    #     the EUP supports bf16 (v6e / v7x). f32 accumulation throughout. -----
    use_bf16_math = _bf16_elementwise_supported()
    w_cat_bf, b_cat_bf = prepare_params(w_s, b_s, w_t, b_t,
                                        use_bf16_matmul=True)
    x_bf, logd_bf = causal_single_stack_nf_forward(
        u, starts, w_cat_bf, b_cat_bf, n_flows=n_flows,
        use_bf16_math=use_bf16_math)
    jax.block_until_ready((x_bf, logd_bf))
    assert jnp.allclose(x_bf, x_ref, atol=5e-2, rtol=5e-2)
    assert jnp.allclose(logd_bf, logd_ref, atol=5e-2, rtol=5e-2)

    print("KERNEL_OK")
</pallas_src>

<mosaic_0001>
module attributes {stable_mosaic.version = 11 : i64} {
  func.func @_stack_kernel(%arg0: i32, %arg1: memref<8x128xf32, #tpu.memory_space<vmem>>, %arg2: memref<8x8xf32, #tpu.memory_space<vmem>>, %arg3: memref<8x768xf32, #tpu.memory_space<vmem>>, %arg4: memref<1x768xf32, #tpu.memory_space<vmem>>, %arg5: memref<8x128xf32, #tpu.memory_space<vmem>>, %arg6: memref<8x1xf32, #tpu.memory_space<vmem>>) attributes {dimension_semantics = [#tpu.dimension_semantics<parallel>], iteration_bounds = array<i64: 2>, scalar_prefetch = 0 : i64, scratch_operands = 0 : i64, tpu.core_type = #tpu.core_type<tc>, window_params = [{transform_indices = @transform_0, window_bounds = array<i64: 8, 128>}, {transform_indices = @transform_1, window_bounds = array<i64: 8, 8>}, {pipeline_mode = #tpu.pipeline_mode<synchronous>, transform_indices = @transform_2, window_bounds = array<i64: 8, 768>}, {pipeline_mode = #tpu.pipeline_mode<synchronous>, transform_indices = @transform_3, window_bounds = array<i64: 1, 768>}, {transform_indices = @transform_4, window_bounds = array<i64: 8, 128>}, {transform_indices = @transform_5, window_bounds = array<i64: 8, 1>}]} {
    %c0 = arith.constant 0 : index
    %c0_0 = arith.constant 0 : index
    %0 = vector.load %arg1[%c0, %c0_0] : memref<8x128xf32, #tpu.memory_space<vmem>>, vector<8x128xf32>
    %c0_1 = arith.constant 0 : index
    %c0_2 = arith.constant 0 : index
    %1 = vector.load %arg2[%c0_1, %c0_2] : memref<8x8xf32, #tpu.memory_space<vmem>>, vector<8x8xf32>
    %c0_3 = arith.constant 0 : index
    %c0_4 = arith.constant 0 : index
    %2 = vector.load %arg3[%c0_3, %c0_4] : memref<8x768xf32, #tpu.memory_space<vmem>>, vector<8x768xf32>
    %cst = arith.constant dense<0.000000e+00> : vector<8x768xf32>
    %3 = tpu.matmul %1, %2, %cst {dimension_numbers = #tpu.dot_dimension_numbers<[1], [0], [0], [1], [0, 0, 1, 1], [], []>} : vector<8x8xf32>, vector<8x768xf32>, vector<8x768xf32> -> vector<8x768xf32>
    %c0_5 = arith.constant 0 : index
    %c0_6 = arith.constant 0 : index
    %4 = vector.load %arg4[%c0_5, %c0_6] : memref<1x768xf32, #tpu.memory_space<vmem>>, vector<1x768xf32>
    %5 = vector.broadcast %4 : vector<1x768xf32> to vector<8x768xf32>
    %6 = arith.addf %3, %5 : vector<8x768xf32>
    %cst_7 = arith.constant 0.000000e+00 : f32
    %7 = vector.broadcast %cst_7 : f32 to vector<8x128xf32>
    %8 = vector.extract_strided_slice %6 {offsets = [0, 0], sizes = [8, 128], strides = [1, 1]} : vector<8x768xf32> to vector<8x128xf32>
    %9 = vector.extract_strided_slice %6 {offsets = [0, 384], sizes = [8, 128], strides = [1, 1]} : vector<8x768xf32> to vector<8x128xf32>
    %10 = math.tanh %8 : vector<8x128xf32>
    %11 = math.exp %10 : vector<8x128xf32>
    %12 = arith.mulf %0, %11 : vector<8x128xf32>
    %13 = arith.addf %12, %9 : vector<8x128xf32>
    %14 = arith.addf %7, %10 : vector<8x128xf32>
    %15 = vector.extract_strided_slice %6 {offsets = [0, 128], sizes = [8, 128], strides = [1, 1]} : vector<8x768xf32> to vector<8x128xf32>
    %16 = vector.extract_strided_slice %6 {offsets = [0, 512], sizes = [8, 128], strides = [1, 1]} : vector<8x768xf32> to vector<8x128xf32>
    %17 = math.tanh %15 : vector<8x128xf32>
    %18 = math.exp %17 : vector<8x128xf32>
    %19 = arith.mulf %13, %18 : vector<8x128xf32>
    %20 = arith.addf %19, %16 : vector<8x128xf32>
    %21 = arith.addf %14, %17 : vector<8x128xf32>
    %22 = vector.extract_strided_slice %6 {offsets = [0, 256], sizes = [8, 128], strides = [1, 1]} : vector<8x768xf32> to vector<8x128xf32>
    %23 = vector.extract_strided_slice %6 {offsets = [0, 640], sizes = [8, 128], strides = [1, 1]} : vector<8x768xf32> to vector<8x128xf32>
    %24 = math.tanh %22 : vector<8x128xf32>
    %25 = math.exp %24 : vector<8x128xf32>
    %26 = arith.mulf %20, %25 : vector<8x128xf32>
    %27 = arith.addf %26, %23 : vector<8x128xf32>
    %28 = arith.addf %21, %24 : vector<8x128xf32>
    %c0_8 = arith.constant 0 : index
    %c0_9 = arith.constant 0 : index
    %29 = vector.load %arg5[%c0_8, %c0_9] : memref<8x128xf32, #tpu.memory_space<vmem>>, vector<8x128xf32>
    tpu.vector_store %arg5[%c0_8, %c0_9], %27 {strides = array<i32>} : memref<8x128xf32, #tpu.memory_space<vmem>>, vector<8x128xf32>,
    %cst_10 = arith.constant dense<0.000000e+00> : vector<8xf32>
    %30 = vector.multi_reduction <add>, %28, %cst_10 [1] : vector<8x128xf32> to vector<8xf32>
    %31 = vector.shape_cast %30 : vector<8xf32> to vector<8x1xf32>
    %c0_11 = arith.constant 0 : index
    %c0_12 = arith.constant 0 : index
    %32 = vector.load %arg6[%c0_11, %c0_12] : memref<8x1xf32, #tpu.memory_space<vmem>>, vector<8x1xf32>
    tpu.vector_store %arg6[%c0_11, %c0_12], %31 {strides = array<i32>} : memref<8x1xf32, #tpu.memory_space<vmem>>, vector<8x1xf32>,
    return
  }
  func.func @transform_0(%arg0: i32) -> (i32, i32) {
    %c0_i32 = arith.constant 0 : i32
    %c0_i32_0 = arith.constant 0 : i32
    return %arg0, %c0_i32 : i32, i32
  }
  func.func @transform_1(%arg0: i32) -> (i32, i32) {
    %c0_i32 = arith.constant 0 : i32
    %c0_i32_0 = arith.constant 0 : i32
    return %arg0, %c0_i32 : i32, i32
  }
  func.func @transform_2(%arg0: i32) -> (i32, i32) {
    %c0_i32 = arith.constant 0 : i32
    %c0_i32_0 = arith.constant 0 : i32
    %c0_i32_1 = arith.constant 0 : i32
    return %c0_i32, %c0_i32_0 : i32, i32
  }
  func.func @transform_3(%arg0: i32) -> (i32, i32) {
    %c0_i32 = arith.constant 0 : i32
    %c0_i32_0 = arith.constant 0 : i32
    %c0_i32_1 = arith.constant 0 : i32
    return %c0_i32, %c0_i32_0 : i32, i32
  }
  func.func @transform_4(%arg0: i32) -> (i32, i32) {
    %c0_i32 = arith.constant 0 : i32
    %c0_i32_0 = arith.constant 0 : i32
    return %arg0, %c0_i32 : i32, i32
  }
  func.func @transform_5(%arg0: i32) -> (i32, i32) {
    %c0_i32 = arith.constant 0 : i32
    %c0_i32_0 = arith.constant 0 : i32
    return %arg0, %c0_i32 : i32, i32
  }
}

</mosaic_0001>

<llo_original>
// kernel: causal_single_stack_nf_forward.1
$region0: #{causal_single_stack_nf_forward.1}
  #allocation0 [shape = 'u32[]', space=smem, size = 0x4, offset = 0x4, fixed_abs, tag = 'smem constant byte address 0x4 - core index']
  #allocation1 [shape = 'u32[144,128]{1,0:T(1,128)}', space=vmem, size = 0x12000, scoped, tag = 'internal scratch']
  %s0 = inlined_call_operand.vmem [shape: f32[16,128], index: 0, kind: input, shape index: {}, may-alias: {0,4}]
  %s1 = inlined_call_operand.vmem [shape: f32[16,8], index: 1, kind: input, shape index: {}]
  %s2 = inlined_call_operand.vmem [shape: f32[8,768], index: 2, kind: input, shape index: {}]
  %s3 = inlined_call_operand.vmem [shape: f32[1,768], index: 3, kind: input, shape index: {}]
  %s4 = inlined_call_operand.vmem [shape: f32[16,128], index: 4, kind: output, shape index: {0}, may-alias: {0,4}]
  %s5 = inlined_call_operand.vmem [shape: f32[16,1], index: 5, kind: output, shape index: {1}]
  %6 = xla_tuple %s4, %s5
  %s7 = sld [smem:[#allocation0]]
  $region57: #{causal_single_stack_nf_forward.1} parent=0
    _
  %s9 = ssub.s32 1, %s7
  %s10 = scalar_select 0, %s9, %s7
  loop: start=0, step=1, limit=4
  $region2: #{causal_single_stack_nf_forward.1} parent=0 // loop_pre_header
    _
  $region3: #{causal_single_stack_nf_forward.1} parent=0 // loop_header
    %s12 = sphi 0, %s16
    %p13 = scmp.ge.s32.totalorder %s12, 4
    %s22 = sphi 0, %s24
    %s25 = sphi 0, %s22
    %s26 = sphi 0, %s25
    %s42 = sphi 0, %s26
    %s48 = sphi 0, %s50
    %s51 = sphi 0, %s48
    %s52 = sphi 0, %s51
    %s68 = sphi 0, %s52
    %s72 = sphi 0, %s72
    %s74 = sphi 0, %s72
    %s75 = sphi 0, %s74
    %s89 = sphi 0, %s75
    %s93 = sphi 0, %s93
    %s95 = sphi 0, %s93
    %s96 = sphi 0, %s95
    %s110 = sphi 0, %s96
    %s116 = sphi 0, %s118
    %s119 = sphi 0, %s116
    %s120 = sphi 0, %s119
    %s136 = sphi 0, %s120
    %s142 = sphi 0, %s144
    %s145 = sphi 0, %s142
    %s146 = sphi 0, %s145
    %s162 = sphi 0, %s146
  $region4: #{causal_single_stack_nf_forward.1} parent=0 // loop_header_branch
    %15 = sbr.rel (%p13) target = $region8
  $region5: #{causal_single_stack_nf_forward.1} parent=0 // loop_body
    %s17 = ssub.s32 %s12, 1
    %s18 = ssub.s32 %s12, 2
    %s19 = sadd.s32 %s12, 1
    %s20 = ssub.s32 %s12, %s19
    %p21 = scmp.eq.s32.totalorder %s20, 0
    %s23 = sadd.s32 %s22, 1
    %s24 = scalar_select %p21, %s22, %s23
    %p27 = pneg %p21
    %p28 = scmp.eq.s32.totalorder %s12, 1
    %p29 = por %p27, %p28
    %p30 = scmp.ne.s32.totalorder %s22, %s25
    %p31 = scmp.eq.s32.totalorder %s12, 0
    %p32 = por %p30, %p31
    %p33 = scmp.ne.s32.totalorder %s22, %s25
    %p34 = scmp.eq.s32.totalorder %s17, 1
    %p35 = por %p33, %p34
    %p36 = scmp.ne.s32.totalorder %s25, %s26
    %p37 = scmp.eq.s32.totalorder %s17, 0
    %p38 = por %p36, %p37
    %p39 = scmp.ne.s32.totalorder %s25, %s26
    %p40 = scmp.eq.s32.totalorder %s18, 1
    %p41 = por %p39, %p40
    %p43 = scmp.ne.s32.totalorder %s26, %s42
    %p44 = scmp.eq.s32.totalorder %s18, 0
    %p45 = por %p43, %p44
    %s46 = ssub.s32 %s12, %s19
    %p47 = scmp.eq.s32.totalorder %s46, 0
    %s49 = sadd.s32 %s48, 1
    %s50 = scalar_select %p47, %s48, %s49
    %p53 = pneg %p47
    %p54 = scmp.eq.s32.totalorder %s12, 1
    %p55 = por %p53, %p54
    %p56 = scmp.ne.s32.totalorder %s48, %s51
    %p57 = scmp.eq.s32.totalorder %s12, 0
    %p58 = por %p56, %p57
    %p59 = scmp.ne.s32.totalorder %s48, %s51
    %p60 = scmp.eq.s32.totalorder %s17, 1
    %p61 = por %p59, %p60
    %p62 = scmp.ne.s32.totalorder %s51, %s52
    %p63 = scmp.eq.s32.totalorder %s17, 0
    %p64 = por %p62, %p63
    %p65 = scmp.ne.s32.totalorder %s51, %s52
    %p66 = scmp.eq.s32.totalorder %s18, 1
    %p67 = por %p65, %p66
    %p69 = scmp.ne.s32.totalorder %s52, %s68
    %p70 = scmp.eq.s32.totalorder %s18, 0
    %p71 = por %p69, %p70
    %s73 = sadd.s32 %s72, 1
    %p76 = scmp.eq.s32.totalorder %s12, 1
    %p77 = scmp.ne.s32.totalorder %s72, %s74
    %p78 = scmp.eq.s32.totalorder %s12, 0
    %p79 = por %p77, %p78
    %p80 = scmp.ne.s32.totalorder %s72, %s74
    %p81 = scmp.eq.s32.totalorder %s17, 1
    %p82 = por %p80, %p81
    %p83 = scmp.ne.s32.totalorder %s74, %s75
    %p84 = scmp.eq.s32.totalorder %s17, 0
    %p85 = por %p83, %p84
    %p86 = scmp.ne.s32.totalorder %s74, %s75
    %p87 = scmp.eq.s32.totalorder %s18, 1
    %p88 = por %p86, %p87
    %p90 = scmp.ne.s32.totalorder %s75, %s89
    %p91 = scmp.eq.s32.totalorder %s18, 0
    %p92 = por %p90, %p91
    %s94 = sadd.s32 %s93, 1
    %p97 = scmp.eq.s32.totalorder %s12, 1
    %p98 = scmp.ne.s32.totalorder %s93, %s95
    %p99 = scmp.eq.s32.totalorder %s12, 0
    %p100 = por %p98, %p99
    %p101 = scmp.ne.s32.totalorder %s93, %s95
    %p102 = scmp.eq.s32.totalorder %s17, 1
    %p103 = por %p101, %p102
    %p104 = scmp.ne.s32.totalorder %s95, %s96
    %p105 = scmp.eq.s32.totalorder %s17, 0
    %p106 = por %p104, %p105
    %p107 = scmp.ne.s32.totalorder %s95, %s96
    %p108 = scmp.eq.s32.totalorder %s18, 1
    %p109 = por %p107, %p108
    %p111 = scmp.ne.s32.totalorder %s96, %s110
    %p112 = scmp.eq.s32.totalorder %s18, 0
    %p113 = por %p111, %p112
    %s114 = ssub.s32 %s12, %s19
    %p115 = scmp.eq.s32.totalorder %s114, 0
    %s117 = sadd.s32 %s116, 1
    %s118 = scalar_select %p115, %s116, %s117
    %p121 = pneg %p115
    %p122 = scmp.eq.s32.totalorder %s12, 1
    %p123 = por %p121, %p122
    %p124 = scmp.ne.s32.totalorder %s116, %s119
    %p125 = scmp.eq.s32.totalorder %s12, 0
    %p126 = por %p124, %p125
    %p127 = scmp.ne.s32.totalorder %s116, %s119
    %p128 = scmp.eq.s32.totalorder %s17, 1
    %p129 = por %p127, %p128
    %p130 = scmp.ne.s32.totalorder %s119, %s120
    %p131 = scmp.eq.s32.totalorder %s17, 0
    %p132 = por %p130, %p131
    %p133 = scmp.ne.s32.totalorder %s119, %s120
    %p134 = scmp.eq.s32.totalorder %s18, 1
    %p135 = por %p133, %p134
    %p137 = scmp.ne.s32.totalorder %s120, %s136
    %p138 = scmp.eq.s32.totalorder %s18, 0
    %p139 = por %p137, %p138
    %s140 = ssub.s32 %s12, %s19
    %p141 = scmp.eq.s32.totalorder %s140, 0
    %s143 = sadd.s32 %s142, 1
    %s144 = scalar_select %p141, %s142, %s143
    %p147 = pneg %p141
    %p148 = scmp.eq.s32.totalorder %s12, 1
    %p149 = por %p147, %p148
    %p150 = scmp.ne.s32.totalorder %s142, %s145
    %p151 = scmp.eq.s32.totalorder %s12, 0
    %p152 = por %p150, %p151
    %p153 = scmp.ne.s32.totalorder %s142, %s145
    %p154 = scmp.eq.s32.totalorder %s17, 1
    %p155 = por %p153, %p154
    %p156 = scmp.ne.s32.totalorder %s145, %s146
    %p157 = scmp.eq.s32.totalorder %s17, 0
    %p158 = por %p156, %p157
    %p159 = scmp.ne.s32.totalorder %s145, %s146
    %p160 = scmp.eq.s32.totalorder %s18, 1
    %p161 = por %p159, %p160
    %p163 = scmp.ne.s32.totalorder %s146, %s162
    %p164 = scmp.eq.s32.totalorder %s18, 0
    %p165 = por %p163, %p164
    %p166 = scmp.le.s32.totalorder 1, %s12
    %p167 = scmp.lt.s32.totalorder %s12, 3
    %p168 = pnand %p166, %p167
    %p169 = pneg %p168
    // Predicated region
    $region9: #{causal_single_stack_nf_forward.1} parent=5 // pred_check
      _
    $region10: #{causal_single_stack_nf_forward.1} parent=5 // pred_check_branch
      %171 = sbr.rel (%p168) target = $region12
    $region11: #{causal_single_stack_nf_forward.1} parent=5 // pred_region
      %s172 = ssub.s32 %s12, 1
      // Predicated region
      $region13: #{causal_single_stack_nf_forward.1} parent=11 // pred_check
        %p173 = pneg %p85
      $region14: #{causal_single_stack_nf_forward.1} parent=11 // pred_check_branch
        %175 = sbr.rel (%p173) target = $region16
      $region15: #{causal_single_stack_nf_forward.1} parent=11 // pred_region
        _
      $region16: #{causal_single_stack_nf_forward.1} parent=11 // pred_fallthru
        _
      // Predicated region
      $region17: #{causal_single_stack_nf_forward.1} parent=11 // pred_check
        %p176 = pneg %p106
      $region18: #{causal_single_stack_nf_forward.1} parent=11 // pred_check_branch
        %178 = sbr.rel (%p176) target = $region20
      $region19: #{causal_single_stack_nf_forward.1} parent=11 // pred_region
        _
      $region20: #{causal_single_stack_nf_forward.1} parent=11 // pred_fallthru
        _
    $region12: #{causal_single_stack_nf_forward.1} parent=5 // pred_fallthru
      _
    %p179 = scmp.lt.s32.totalorder %s12, 2
    // Predicated region
    $region21: #{causal_single_stack_nf_forward.1} parent=5 // pred_check
      %p180 = pneg %p179
    $region22: #{causal_single_stack_nf_forward.1} parent=5 // pred_check_branch
      %182 = sbr.rel (%p180) target = $region24
    $region23: #{causal_single_stack_nf_forward.1} parent=5 // pred_region
      // Predicated region
      $region25: #{causal_single_stack_nf_forward.1} parent=23 // pred_check
        %p183 = pneg %p32
      $region26: #{causal_single_stack_nf_forward.1} parent=23 // pred_check_branch
        %185 = sbr.rel (%p183) target = $region28
      $region27: #{causal_single_stack_nf_forward.1} parent=23 // pred_region
        %p186 = scmp.lt.s32.totalorder %s12, 1
        %s187 = scalar_select %p186, %s12, 1
        %s188 = smul.addr %s187, 8
        %s189 = scalar_lea.vmem %s0, %s188
      $region28: #{causal_single_stack_nf_forward.1} parent=23 // pred_fallthru
        _
      // Predicated region
      $region29: #{causal_single_stack_nf_forward.1} parent=23 // pred_check
        %p190 = pneg %p58
      $region30: #{causal_single_stack_nf_forward.1} parent=23 // pred_check_branch
        %192 = sbr.rel (%p190) target = $region32
      $region31: #{causal_single_stack_nf_forward.1} parent=23 // pred_region
        %p193 = scmp.lt.s32.totalorder %s12, 1
        %s194 = scalar_select %p193, %s12, 1
        %s195 = smul.addr %s194, 8
        %s196 = scalar_lea.vmem %s1, %s195
      $region32: #{causal_single_stack_nf_forward.1} parent=23 // pred_fallthru
        _
    $region24: #{causal_single_stack_nf_forward.1} parent=5 // pred_fallthru
      _
    %p197 = scmp.le.s32.totalorder 1, %s12
    %p198 = scmp.lt.s32.totalorder %s12, 3
    %p199 = pnand %p197, %p198
    %p200 = pneg %p199
    // Predicated region
    $region33: #{causal_single_stack_nf_forward.1} parent=5 // pred_check
      _
    $region34: #{causal_single_stack_nf_forward.1} parent=5 // pred_check_branch
      %202 = sbr.rel (%p199) target = $region36
    $region35: #{causal_single_stack_nf_forward.1} parent=5 // pred_region
      %s203 = ssub.s32 %s12, 1
      %p204 = scmp.lt.s32.totalorder %s17, 1
      %s205 = scalar_select %p204, %s17, 1
      %s206 = smul.addr %s205, 8
      %s207 = scalar_lea.vmem %s0, %s206
      %p208 = pneg %p38
      %p209 = pneg %p35
      %p210 = scmp.lt.s32.totalorder %s17, 1
      %s211 = scalar_select %p210, %s17, 1
      %s212 = smul.addr %s211, 8
      %s213 = scalar_lea.vmem %s1, %s212
      %p214 = pneg %p64
      %p215 = pneg %p61
      %p216 = pneg %p85
      %p217 = pneg %p82
      %p218 = pneg %p106
      %p219 = pneg %p103
      %p220 = pneg %p132
      %p221 = pneg %p129
      %p222 = scmp.lt.s32.totalorder %s17, 1
      %s223 = scalar_select %p222, %s17, 1
      %s224 = smul.addr %s223, 8
      %s225 = scalar_lea.vmem %s4, %s224
      %p226 = pneg %p158
      %p227 = pneg %p155
      %p228 = scmp.lt.s32.totalorder %s17, 1
      %s229 = scalar_select %p228, %s17, 1
      %s230 = smul.addr %s229, 8
      %s231 = scalar_lea.vmem %s5, %s230
      %p232 = scmp.lt.s32.totalorder %s17, 1
      %s233 = scalar_select %p232, %s17, 1
      %s234 = smul.addr %s233, 8
      %s235 = scalar_lea.vmem %s0, %s234
      %p236 = scmp.lt.s32.totalorder %s17, 1
      %s237 = scalar_select %p236, %s17, 1
      %s238 = smul.addr %s237, 8
      %s239 = scalar_lea.vmem %s1, %s238
      %p240 = scmp.lt.s32.totalorder %s17, 1
      %s241 = scalar_select %p240, %s17, 1
      %s242 = smul.addr %s241, 8
      %s243 = scalar_lea.vmem %s4, %s242
      %p244 = scmp.lt.s32.totalorder %s17, 1
      %s245 = scalar_select %p244, %s17, 1
      %s246 = smul.addr %s245, 8
      %s247 = scalar_lea.vmem %s5, %s246
      %v248 = vld [vmem:[%s235] sm:$0xff]
      %v249 = vld [vmem:[%s239] sm:$0xff]
      %v250 = vld [vmem:[%s2] sm:$0xff]
      %v251 = vld [vmem:[%s2 + $0x8] sm:$0xff]
      %v252 = vld [vmem:[%s2 + $0x10] sm:$0xff]
      %v253 = vld [vmem:[%s2 + $0x18] sm:$0xff]
      %v254 = vld [vmem:[%s2 + $0x20] sm:$0xff]
      %v255 = vld [vmem:[%s2 + $0x28] sm:$0xff]
      %v256 = vld [vmem:[%s3] sm:$0x3f]
      %v258 = vlaneseq
      %v259 = vshrl.u32 %v258, 7
      %v260 = vsub.s32 0, %v259
      %v261 = vrot.slane %v256, %v260
      %v262 = vlaneseq
      %v263 = vshrl.u32 %v262, 7
      %v264 = vsub.s32 1, %v263
      %v265 = vrot.slane %v256, %v264
      %v266 = vlaneseq
      %v267 = vshrl.u32 %v266, 7
      %v268 = vsub.s32 2, %v267
      %v269 = vrot.slane %v256, %v268
      %v270 = vlaneseq
      %v271 = vshrl.u32 %v270, 7
      %v272 = vsub.s32 3, %v271
      %v273 = vrot.slane %v256, %v272
      %v274 = vlaneseq
      %v275 = vshrl.u32 %v274, 7
      %v276 = vsub.s32 4, %v275
      %v277 = vrot.slane %v256, %v276
      %v278 = vlaneseq
      %v279 = vshrl.u32 %v278, 7
      %v280 = vsub.s32 5, %v279
      %v281 = vrot.slane %v256, %v280
      %vm288 = vcmask 64512
      %v290 = vsel %vm288, %v249, 0
      %292 = vmatprep.subr.mxu0 %v251
      %293 = vmatpush1.msra.mxu0 %v250
      %294 = vmatprep.subr.mxu0 0.0
      %295 = vmatpush1.msra.mxu0 0.0
      %296 = vmatprep.subr.mxu0 0.0
      %297 = vmatpush1.msra.mxu0 0.0
      %298 = vmatprep.subr.mxu0 0.0
      %299 = vmatpush1.msra.mxu0 0.0
      %300 = vmatprep.subr.mxu0 0.0
      %301 = vmatpush1.msra.mxu0 0.0
      %302 = vmatprep.subr.mxu0 0.0
      %303 = vmatpush1.msra.mxu0 0.0
      %304 = vmatprep.subr.mxu0 0.0
      %305 = vmatpush1.msra.mxu0 0.0
      %306 = vmatprep.subr.mxu0 0.0
      %307 = vmatpush1.msra.mxu0 0.0
      %308 = vmatprep.subr.mxu0 0.0
      %309 = vmatpush1.msra.mxu0 0.0
      %310 = vmatprep.subr.mxu0 0.0
      %311 = vmatpush1.msra.mxu0 0.0
      %312 = vmatprep.subr.mxu0 0.0
      %313 = vmatpush1.msra.mxu0 0.0
      %314 = vmatprep.subr.mxu0 0.0
      %315 = vmatpush1.msra.mxu0 0.0
      %316 = vmatprep.subr.mxu0 0.0
      %317 = vmatpush1.msra.mxu0 0.0
      %318 = vmatprep.subr.mxu0 0.0
      %319 = vmatpush1.msra.mxu0 0.0
      %320 = vmatprep.subr.mxu0 0.0
      %321 = vmatpush1.msra.mxu0 0.0
      %322 = vmatprep.subr.mxu0 0.0
      %323 = vmatpush1.msra.mxu0 0.0
      %324 = vmatprep.subr.mxu0 0.0
      %325 = vmatpush1.msra.mxu0 0.0
      %326 = vmatprep.subr.mxu0 0.0
      %327 = vmatpush1.msra.mxu0 0.0
      %328 = vmatprep.subr.mxu0 0.0
      %329 = vmatpush1.msra.mxu0 0.0
      %330 = vmatprep.subr.mxu0 0.0
      %331 = vmatpush1.msra.mxu0 0.0
      %332 = vmatprep.subr.mxu0 0.0
      %333 = vmatpush1.msra.mxu0 0.0
      %334 = vmatprep.subr.mxu0 0.0
      %335 = vmatpush1.msra.mxu0 0.0
      %336 = vmatprep.subr.mxu0 0.0
      %337 = vmatpush1.msra.mxu0 0.0
      %338 = vmatprep.subr.mxu0 0.0
      %339 = vmatpush1.msra.mxu0 0.0
      %340 = vmatprep.subr.mxu0 0.0
      %341 = vmatpush1.msra.mxu0 0.0
      %342 = vmatprep.subr.mxu0 0.0
      %343 = vmatpush1.msra.mxu0 0.0
      %344 = vmatprep.subr.mxu0 0.0
      %345 = vmatpush1.msra.mxu0 0.0
      %346 = vmatprep.subr.mxu0 0.0
      %347 = vmatpush1.msra.mxu0 0.0
      %348 = vmatprep.subr.mxu0 0.0
      %349 = vmatpush1.msra.mxu0 0.0
      %350 = vmatprep.subr.mxu0 0.0
      %351 = vmatpush1.msra.mxu0 0.0
      %352 = vmatprep.subr.mxu0 0.0
      %353 = vmatpush1.msra.mxu0 0.0
      %354 = vmatprep.subr.mxu0 0.0
      %355 = vmatpush1.msra.mxu0 0.0
      %356 = vmatprep.mubr.f32.mxu0 0.0
      %357 = vmatmul.mubr.f32.gmra.mrb[0].mxu0 %v290
      %v358 = vpop.f32.mrb[0].mxu0
      %v359 = vadd.f32 %v261, %v358
      %v360 = vpop.f32.mrb[0].mxu0
      %v361 = vadd.f32 %v265, %v360
      %362 = vdwg.mxu0
      %363 = vmatprep.subr.mxu0 %v253
      %364 = vmatpush1.msra.mxu0 %v252
      %365 = vmatprep.subr.mxu0 0.0
      %366 = vmatpush1.msra.mxu0 0.0
      %367 = vmatprep.subr.mxu0 0.0
      %368 = vmatpush1.msra.mxu0 0.0
      %369 = vmatprep.subr.mxu0 0.0
      %370 = vmatpush1.msra.mxu0 0.0
      %371 = vmatprep.subr.mxu0 0.0
      %372 = vmatpush1.msra.mxu0 0.0
      %373 = vmatprep.subr.mxu0 0.0
      %374 = vmatpush1.msra.mxu0 0.0
      %375 = vmatprep.subr.mxu0 0.0
      %376 = vmatpush1.msra.mxu0 0.0
      %377 = vmatprep.subr.mxu0 0.0
      %378 = vmatpush1.msra.mxu0 0.0
      %379 = vmatprep.subr.mxu0 0.0
      %380 = vmatpush1.msra.mxu0 0.0
      %381 = vmatprep.subr.mxu0 0.0
      %382 = vmatpush1.msra.mxu0 0.0
      %383 = vmatprep.subr.mxu0 0.0
      %384 = vmatpush1.msra.mxu0 0.0
      %385 = vmatprep.subr.mxu0 0.0
      %386 = vmatpush1.msra.mxu0 0.0
      %387 = vmatprep.subr.mxu0 0.0
      %388 = vmatpush1.msra.mxu0 0.0
      %389 = vmatprep.subr.mxu0 0.0
      %390 = vmatpush1.msra.mxu0 0.0
      %391 = vmatprep.subr.mxu0 0.0
      %392 = vmatpush1.msra.mxu0 0.0
      %393 = vmatprep.subr.mxu0 0.0
      %394 = vmatpush1.msra.mxu0 0.0
      %395 = vmatprep.subr.mxu0 0.0
      %396 = vmatpush1.msra.mxu0 0.0
      %397 = vmatprep.subr.mxu0 0.0
      %398 = vmatpush1.msra.mxu0 0.0
      %399 = vmatprep.subr.mxu0 0.0
      %400 = vmatpush1.msra.mxu0 0.0
      %401 = vmatprep.subr.mxu0 0.0
      %402 = vmatpush1.msra.mxu0 0.0
      %403 = vmatprep.subr.mxu0 0.0
      %404 = vmatpush1.msra.mxu0 0.0
      %405 = vmatprep.subr.mxu0 0.0
      %406 = vmatpush1.msra.mxu0 0.0
      %407 = vmatprep.subr.mxu0 0.0
      %408 = vmatpush1.msra.mxu0 0.0
      %409 = vmatprep.subr.mxu0 0.0
      %410 = vmatpush1.msra.mxu0 0.0
      %411 = vmatprep.subr.mxu0 0.0
      %412 = vmatpush1.msra.mxu0 0.0
      %413 = vmatprep.subr.mxu0 0.0
      %414 = vmatpush1.msra.mxu0 0.0
      %415 = vmatprep.subr.mxu0 0.0
      %416 = vmatpush1.msra.mxu0 0.0
      %417 = vmatprep.subr.mxu0 0.0
      %418 = vmatpush1.msra.mxu0 0.0
      %419 = vmatprep.subr.mxu0 0.0
      %420 = vmatpush1.msra.mxu0 0.0
      %421 = vmatprep.subr.mxu0 0.0
      %422 = vmatpush1.msra.mxu0 0.0
      %423 = vmatprep.subr.mxu0 0.0
      %424 = vmatpush1.msra.mxu0 0.0
      %425 = vmatprep.subr.mxu0 0.0
      %426 = vmatpush1.msra.mxu0 0.0
      %427 = vmatprep.mubr.f32.mxu0 0.0
      %428 = vmatmul.mubr.f32.gmra.mrb[0].mxu0 %v290
      %v429 = vpop.f32.mrb[0].mxu0
      %v430 = vadd.f32 %v269, %v429
      %v431 = vpop.f32.mrb[0].mxu0
      %v432 = vadd.f32 %v273, %v431
      %433 = vdwg.mxu0
      %434 = vmatprep.subr.mxu0 %v255
      %435 = vmatpush1.msra.mxu0 %v254
      %436 = vmatprep.subr.mxu0 0.0
      %437 = vmatpush1.msra.mxu0 0.0
      %438 = vmatprep.subr.mxu0 0.0
      %439 = vmatpush1.msra.mxu0 0.0
      %440 = vmatprep.subr.mxu0 0.0
      %441 = vmatpush1.msra.mxu0 0.0
      %442 = vmatprep.subr.mxu0 0.0
      %443 = vmatpush1.msra.mxu0 0.0
      %444 = vmatprep.subr.mxu0 0.0
      %445 = vmatpush1.msra.mxu0 0.0
      %446 = vmatprep.subr.mxu0 0.0
      %447 = vmatpush1.msra.mxu0 0.0
      %448 = vmatprep.subr.mxu0 0.0
      %449 = vmatpush1.msra.mxu0 0.0
      %450 = vmatprep.subr.mxu0 0.0
      %451 = vmatpush1.msra.mxu0 0.0
      %452 = vmatprep.subr.mxu0 0.0
      %453 = vmatpush1.msra.mxu0 0.0
      %454 = vmatprep.subr.mxu0 0.0
      %455 = vmatpush1.msra.mxu0 0.0
      %456 = vmatprep.subr.mxu0 0.0
      %457 = vmatpush1.msra.mxu0 0.0
      %458 = vmatprep.subr.mxu0 0.0
      %459 = vmatpush1.msra.mxu0 0.0
      %460 = vmatprep.subr.mxu0 0.0
      %461 = vmatpush1.msra.mxu0 0.0
      %462 = vmatprep.subr.mxu0 0.0
      %463 = vmatpush1.msra.mxu0 0.0
      %464 = vmatprep.subr.mxu0 0.0
      %465 = vmatpush1.msra.mxu0 0.0
      %466 = vmatprep.subr.mxu0 0.0
      %467 = vmatpush1.msra.mxu0 0.0
      %468 = vmatprep.subr.mxu0 0.0
      %469 = vmatpush1.msra.mxu0 0.0
      %470 = vmatprep.subr.mxu0 0.0
      %471 = vmatpush1.msra.mxu0 0.0
      %472 = vmatprep.subr.mxu0 0.0
      %473 = vmatpush1.msra.mxu0 0.0
      %474 = vmatprep.subr.mxu0 0.0
      %475 = vmatpush1.msra.mxu0 0.0
      %476 = vmatprep.subr.mxu0 0.0
      %477 = vmatpush1.msra.mxu0 0.0
      %478 = vmatprep.subr.mxu0 0.0
      %479 = vmatpush1.msra.mxu0 0.0
      %480 = vmatprep.subr.mxu0 0.0
      %481 = vmatpush1.msra.mxu0 0.0
      %482 = vmatprep.subr.mxu0 0.0
      %483 = vmatpush1.msra.mxu0 0.0
      %484 = vmatprep.subr.mxu0 0.0
      %485 = vmatpush1.msra.mxu0 0.0
      %486 = vmatprep.subr.mxu0 0.0
      %487 = vmatpush1.msra.mxu0 0.0
      %488 = vmatprep.subr.mxu0 0.0
      %489 = vmatpush1.msra.mxu0 0.0
      %490 = vmatprep.subr.mxu0 0.0
      %491 = vmatpush1.msra.mxu0 0.0
      %492 = vmatprep.subr.mxu0 0.0
      %493 = vmatpush1.msra.mxu0 0.0
      %494 = vmatprep.subr.mxu0 0.0
      %495 = vmatpush1.msra.mxu0 0.0
      %496 = vmatprep.subr.mxu0 0.0
      %497 = vmatpush1.msra.mxu0 0.0
      %498 = vmatprep.mubr.f32.mxu0 0.0
      %499 = vmatmul.mubr.f32.gmra.mrb[0].mxu0 %v290
      %v500 = vpop.f32.mrb[0].mxu0
      %v501 = vadd.f32 %v277, %v500
      %v502 = vpop.f32.mrb[0].mxu0
      %v503 = vadd.f32 %v281, %v502
      %504 = vdwg.mxu0
      %v505 = vtanh.pop %v359
      %v506 = vmul.f32 %v505, 1.442695
      %v507 = vpow.pop %v506
      %v508 = vmul.f32 %v248, %v507
      %v509 = vadd.f32 %v508, %v432
      %v510 = vadd.f32 %v505, 0.0
      %v511 = vtanh.pop %v361
      %v512 = vmul.f32 %v511, 1.442695
      %v513 = vpow.pop %v512
      %v514 = vmul.f32 %v509, %v513
      %v515 = vadd.f32 %v514, %v501
      %v516 = vadd.f32 %v510, %v511
      %v517 = vtanh.pop %v430
      %v518 = vmul.f32 %v517, 1.442695
      %v519 = vpow.pop %v518
      %v520 = vmul.f32 %v515, %v519
      %v521 = vadd.f32 %v520, %v503
      %v522 = vadd.f32 %v516, %v517
      %523 = vst [vmem:[%s243] sm:$0xff] %v521
      %524 = vadd.xlane.f32.xlu0 %v522
      %v525 = vpop.xlane.xlu0 %524
      %vm526 = vcmask 7168
      %527 = vst.msk [vmem:[%s247] sm:$0xff] %vm526, %v525
      %p528 = scmp.lt.s32.totalorder %s17, 1
      %s529 = scalar_select %p528, %s17, 1
      %s530 = smul.addr %s529, 8
      %s531 = scalar_lea.vmem %s4, %s530
      %p532 = scmp.lt.s32.totalorder %s17, 1
      %s533 = scalar_select %p532, %s17, 1
      %s534 = smul.addr %s533, 8
      %s535 = scalar_lea.vmem %s5, %s534
      // Predicated region
      $region37: #{causal_single_stack_nf_forward.1} parent=35 // pred_check
        %p536 = pneg %p129
      $region38: #{causal_single_stack_nf_forward.1} parent=35 // pred_check_branch
        %538 = sbr.rel (%p536) target = $region40
      $region39: #{causal_single_stack_nf_forward.1} parent=35 // pred_region
        _
      $region40: #{causal_single_stack_nf_forward.1} parent=35 // pred_fallthru
        _
      // Predicated region
      $region41: #{causal_single_stack_nf_forward.1} parent=35 // pred_check
        %p539 = pneg %p155
      $region42: #{causal_single_stack_nf_forward.1} parent=35 // pred_check_branch
        %541 = sbr.rel (%p539) target = $region44
      $region43: #{causal_single_stack_nf_forward.1} parent=35 // pred_region
        _
      $region44: #{causal_single_stack_nf_forward.1} parent=35 // pred_fallthru
        _
    $region36: #{causal_single_stack_nf_forward.1} parent=5 // pred_fallthru
      _
    %p542 = scmp.le.s32.totalorder 2, %s12
    // Predicated region
    $region45: #{causal_single_stack_nf_forward.1} parent=5 // pred_check
      %p543 = pneg %p542
    $region46: #{causal_single_stack_nf_forward.1} parent=5 // pred_check_branch
      %545 = sbr.rel (%p543) target = $region48
    $region47: #{causal_single_stack_nf_forward.1} parent=5 // pred_region
      %s546 = ssub.s32 %s12, 2
      // Predicated region
      $region49: #{causal_single_stack_nf_forward.1} parent=47 // pred_check
        %p547 = pneg %p135
      $region50: #{causal_single_stack_nf_forward.1} parent=47 // pred_check_branch
        %549 = sbr.rel (%p547) target = $region52
      $region51: #{causal_single_stack_nf_forward.1} parent=47 // pred_region
        %p550 = scmp.lt.s32.totalorder %s18, 1
        %s551 = scalar_select %p550, %s18, 1
        %s552 = smul.addr %s551, 8
        %s553 = scalar_lea.vmem %s4, %s552
      $region52: #{causal_single_stack_nf_forward.1} parent=47 // pred_fallthru
        _
      // Predicated region
      $region53: #{causal_single_stack_nf_forward.1} parent=47 // pred_check
        %p554 = pneg %p161
      $region54: #{causal_single_stack_nf_forward.1} parent=47 // pred_check_branch
        %556 = sbr.rel (%p554) target = $region56
      $region55: #{causal_single_stack_nf_forward.1} parent=47 // pred_region
        %p557 = scmp.lt.s32.totalorder %s18, 1
        %s558 = scalar_select %p557, %s18, 1
        %s559 = smul.addr %s558, 8
        %s560 = scalar_lea.vmem %s5, %s559
      $region56: #{causal_single_stack_nf_forward.1} parent=47 // pred_fallthru
        _
    $region48: #{causal_single_stack_nf_forward.1} parent=5 // pred_fallthru
      _
  $region6: #{causal_single_stack_nf_forward.1} parent=0 // loop_footer
    %s16 = sadd.s32 1, %s12
  $region7: #{causal_single_stack_nf_forward.1} parent=0 // loop_footer_branch
    %11 = sbr.rel target = $region3
  $region8: #{causal_single_stack_nf_forward.1} parent=0 // loop_exit
    _

</llo_original>
